<compile_context>
chip_gen: v6e
topology: v6e:2x2x1
jax: 0.10.0
libtpu: 0.0.40
codegen_flags: <defaults>
</compile_context>

<pallas_src>
import functools

import jax
import jax.numpy as jnp
import numpy as np
from jax.experimental import pallas as pl
from jax.experimental.pallas import tpu as pltpu

NEG_INF = -1e30   # "very negative" logit for non-edges (sentinel, not exact in bf16/f32)
LANE = 128        # lane width; feature dims and the node axis are padded to multiples
ROW_TILE = 128    # max destination-row tile (tm); shrunk so the parallel axis has >=2 steps
COL_TILE_MAX = 512  # max source-column tile (tk); largest of 512/256/128 dividing n_pad


def _round_up(x, m):
    return ((x + m - 1) // m) * m


def _pad2(a, rows, cols):
    r, c = a.shape
    return jnp.pad(a.astype(jnp.float32), ((0, rows - r), (0, cols - c)))


def _gat_attn_kernel(d_ref, s_ref, h_ref, mask_ref, bias_ref, out_ref,
                     m_sc, l_sc, acc_sc, *, apply_elu):
    """Online-softmax GAT attention for one (row-tile, col-tile) grid step.

    d_ref    : [TM, 1]    f32   d_i = <h_i, a_dst> for this tile's destination rows
    s_ref    : [1, TK]    f32   s_j = <h_j, a_src> for this tile's source columns
    h_ref    : [TK, F]    bf16  projected source features
    mask_ref : [TM, TK]   int8  1 where edge j -> i (self loops included), 0 otherwise
    bias_ref : [1, F]     f32   output bias
    out_ref  : [TM, F]          written on the last column tile only
    m/l/acc  : VMEM scratch     running max / denom / weighted sum (f32)
    """
    k = pl.program_id(1)

    @pl.when(k == 0)
    def _():
        m_sc[...] = jnp.full_like(m_sc, NEG_INF)
        l_sc[...] = jnp.zeros_like(l_sc)
        acc_sc[...] = jnp.zeros_like(acc_sc)

    edge = mask_ref[...] != 0                                   # (TM, TK) bool
    e = d_ref[...] + s_ref[...]                                 # (TM,1)+(1,TK) -> (TM,TK)
    e = jnp.where(e > 0, e, 0.2 * e)                            # LeakyReLU(0.2)
    logits = jnp.where(edge, e, NEG_INF)

    m_prev = m_sc[...]                                          # (TM, 1)
    m_new = jnp.maximum(m_prev, jnp.max(logits, axis=-1, keepdims=True))
    alpha = jnp.exp(m_prev - m_new)
    # Explicit zeroing (not underflow): a fully-masked (row, col-tile) pair would
    # otherwise contribute exp(0) = 1 per entry after the max shift.
    p = jnp.where(edge, jnp.exp(logits - m_new), 0.0)           # (TM, TK) f32

    l_sc[...] = alpha * l_sc[...] + jnp.sum(p, axis=-1, keepdims=True)
    acc_sc[...] = alpha * acc_sc[...] + jnp.dot(
        p.astype(jnp.bfloat16), h_ref[...],                     # bf16 MXU, f32 accumulate
        preferred_element_type=jnp.float32)
    m_sc[...] = m_new

    @pl.when(k == pl.num_programs(1) - 1)
    def _():
        # Normalize after aggregation: TM*F multiplies by an EUP reciprocal (denom >= 1
        # because every row has a self loop, so the approx rcp error is negligible).
        out = acc_sc[...] * pl.reciprocal(l_sc[...], approx=True) + bias_ref[...]
        if apply_elu:
            out = jnp.where(out > 0, out, jnp.exp(jnp.minimum(out, 0.0)) - 1.0)
        out_ref[...] = out.astype(out_ref.dtype)


def _gat_attn_call(d, s, h, mask, bias, *, tm, tk, out_dtype, apply_elu):
    n_pad, f = h.shape
    grid = (n_pad // tm, n_pad // tk)
    kernel = functools.partial(_gat_attn_kernel, apply_elu=apply_elu)
    out_bytes = jnp.dtype(out_dtype).itemsize

    # VMEM footprint estimate: double-buffered streams + scratch + live (TM,TK) temporaries.
    est = (2 * tm * tk                                  # int8 mask tile
           + 2 * tk * f * 2                             # bf16 h tile
           + 2 * 8 * tk * 4                             # s tile (sublane-padded)
           + 2 * tm * LANE * 4                          # d tile (lane-padded)
           + 2 * 8 * f * 4                              # bias
           + 2 * tm * f * out_bytes                     # output tile
           + 2 * tm * LANE * 4 + tm * f * 4             # m/l/acc scratch
           + 6 * tm * tk * 4)                           # live f32 temporaries
    vmem_limit = int(min(48 * 1024 * 1024, max(8 * 1024 * 1024, 2 * est)))

    cost = pl.CostEstimate(
        flops=2 * n_pad * n_pad * f,
        transcendentals=n_pad * n_pad,
        bytes_accessed=(n_pad * n_pad                   # int8 mask (dominant stream)
                        + (n_pad // tm) * n_pad * f * 2  # h re-streamed per row tile (bf16)
                        + n_pad * f * out_bytes
                        + n_pad * 8),
    )

    return pl.pallas_call(
        kernel,
        out_shape=jax.ShapeDtypeStruct((n_pad, f), out_dtype),
        grid_spec=pltpu.PrefetchScalarGridSpec(
            num_scalar_prefetch=0,
            grid=grid,
            in_specs=[
                pl.BlockSpec((tm, 1), lambda i, k: (i, 0)),    # d_i (destination scores)
                pl.BlockSpec((1, tk), lambda i, k: (0, k)),    # s_j (source scores)
                pl.BlockSpec((tk, f), lambda i, k: (k, 0)),    # h_j (bf16 source features)
                pl.BlockSpec((tm, tk), lambda i, k: (i, k)),   # int8 adjacency tile
                pl.BlockSpec((1, f), lambda i, k: (0, 0)),     # bias (resident)
            ],
            out_specs=pl.BlockSpec((tm, f), lambda i, k: (i, 0)),  # lane-dense (F % 128 == 0)
            scratch_shapes=[
                pltpu.VMEM((tm, 1), jnp.float32),   # running max
                pltpu.VMEM((tm, 1), jnp.float32),   # running denominator
                pltpu.VMEM((tm, f), jnp.float32),   # running weighted sum
            ],
        ),
        compiler_params=pltpu.CompilerParams(
            dimension_semantics=("parallel", "arbitrary"),     # rows shard across TCs on v7x
            vmem_limit_bytes=vmem_limit,
        ),
        cost_estimate=cost,
    )(d, s, h, mask, bias)


def _project(x_pad, w, a_src, a_dst):
    """Hoisted per-layer projection (computed ONCE, not per row tile)."""
    h = jnp.dot(x_pad.astype(jnp.bfloat16), w.astype(jnp.bfloat16),
                preferred_element_type=jnp.float32)            # (N_pad, F) f32 accumulate
    s = jnp.sum(h * a_src, axis=-1)[None, :]                   # (1, N_pad)
    d = jnp.sum(h * a_dst, axis=-1)[:, None]                   # (N_pad, 1)
    return h.astype(jnp.bfloat16), s, d


def build_mask(edge_index, n_pad):
    """int8 adjacency [N_pad, N_pad]: 1 where edge j->i exists; self loops on EVERY row
    (including padded rows, so every softmax denominator is >= 1 and stays finite)."""
    src = edge_index[0]
    dst = edge_index[1]
    mask = jnp.zeros((n_pad, n_pad), jnp.int8)
    mask = mask.at[dst, src].set(1)
    diag = jnp.arange(n_pad)
    mask = mask.at[diag, diag].set(1)
    return mask


def gat_encoder(x, edge_index, params):
    """GATEncoder forward: conv1 -> ELU -> conv2 (dropout p=0.0 is the identity)."""
    N, c_in = x.shape
    hidden = params["w1"].shape[1]
    out_ch = params["w2"].shape[1]

    n_pad = _round_up(N, LANE)
    # >= 2 row tiles so the "parallel" axis can shard across v7x's two TensorCores.
    tm = min(ROW_TILE, n_pad // 2)
    # Largest column tile in {512, 256, 128} that divides n_pad (amortizes per-step cost
    # on v5e/v6e while keeping VMEM bounded on v7x).
    tk = COL_TILE_MAX
    while n_pad % tk != 0:
        tk //= 2
    h_pad = _round_up(hidden, LANE)
    o_pad = _round_up(out_ch, LANE)

    x_p = jnp.pad(x.astype(jnp.float32), ((0, n_pad - N), (0, 0)))
    mask = build_mask(edge_index, n_pad)

    w1 = _pad2(params["w1"], c_in, h_pad)
    a1s = _pad2(params["a1_src"], 1, h_pad)
    a1d = _pad2(params["a1_dst"], 1, h_pad)
    b1 = _pad2(params["b1"], 1, h_pad)

    w2 = _pad2(params["w2"], h_pad, o_pad)
    a2s = _pad2(params["a2_src"], 1, o_pad)
    a2d = _pad2(params["a2_dst"], 1, o_pad)
    b2 = _pad2(params["b2"], 1, o_pad)

    # conv1 (+ELU fused into the finalize); intermediate emitted in bf16.
    h1_src, s1, d1 = _project(x_p, w1, a1s, a1d)
    h1 = _gat_attn_call(d1, s1, h1_src, mask, b1, tm=tm, tk=tk,
                        out_dtype=jnp.bfloat16, apply_elu=True)
    # conv2 consumes the bf16 intermediate directly.
    h2_src, s2, d2 = _project(h1, w2, a2s, a2d)
    out = _gat_attn_call(d2, s2, h2_src, mask, b2, tm=tm, tk=tk,
                         out_dtype=jnp.float32, apply_elu=False)
    return out[:N, :out_ch]


def init_params(key, in_channels, out_channels, hidden=64, heads=1):
    # heads=1 is the GATEncoder config exercised here (conv2 always heads=1, concat=False).
    assert heads == 1
    ks = jax.random.split(key, 6)

    def scale(fan_in):
        return 1.0 / jnp.sqrt(jnp.float32(fan_in))

    return dict(
        w1=jax.random.normal(ks[0], (in_channels, hidden), jnp.float32) * scale(in_channels),
        a1_src=jax.random.normal(ks[1], (1, hidden), jnp.float32) * scale(hidden),
        a1_dst=jax.random.normal(ks[2], (1, hidden), jnp.float32) * scale(hidden),
        b1=jnp.zeros((1, hidden), jnp.float32),
        w2=jax.random.normal(ks[3], (hidden, out_channels), jnp.float32) * scale(hidden),
        a2_src=jax.random.normal(ks[4], (1, out_channels), jnp.float32) * scale(out_channels),
        a2_dst=jax.random.normal(ks[5], (1, out_channels), jnp.float32) * scale(out_channels),
        b2=jnp.zeros((1, out_channels), jnp.float32),
    )


def gat_encoder_ref(x, edge_index, params):
    """Pure-JAX f32 reference of the same dense-masked GAT math (unpadded)."""
    N = x.shape[0]
    src, dst = edge_index[0], edge_index[1]
    adj = jnp.zeros((N, N), jnp.float32).at[dst, src].set(1.0)
    adj = jnp.maximum(adj, jnp.eye(N, dtype=jnp.float32))   # self loops

    def layer(h_in, W, a_src, a_dst, bias):
        h = h_in @ W
        s = (h * a_src).sum(-1)[None, :]
        d = (h * a_dst).sum(-1)[:, None]
        e = d + s
        e = jnp.where(e > 0, e, 0.2 * e)
        logits = jnp.where(adj > 0, e, NEG_INF)
        logits = logits - logits.max(-1, keepdims=True)
        p = jnp.exp(logits) * adj
        attn = p / p.sum(-1, keepdims=True)
        return attn @ h + bias

    h1 = jax.nn.elu(layer(x.astype(jnp.float32), params["w1"],
                          params["a1_src"], params["a1_dst"], params["b1"]))
    return layer(h1, params["w2"], params["a2_src"], params["a2_dst"], params["b2"])


if __name__ == "__main__":
    key = jax.random.PRNGKey(0)
    k_x, k_src, k_dst, k_p = jax.random.split(key, 4)

    N = 16        # number of graph nodes
    IN_CH = 8     # in_channels
    OUT_CH = 8    # out_channels
    HIDDEN = 64   # hidden (module default)
    E = 40        # number of directed edges

    x = jax.random.normal(k_x, (N, IN_CH), jnp.float32)
    edge_index = jnp.stack([
        jax.random.randint(k_src, (E,), 0, N, dtype=jnp.int32),   # row 0 = source
        jax.random.randint(k_dst, (E,), 0, N, dtype=jnp.int32),   # row 1 = destination
    ], axis=0)                                                     # [2, E]

    params = init_params(k_p, IN_CH, OUT_CH, hidden=HIDDEN, heads=1)

    out = gat_encoder(x, edge_index, params)
    out = jax.block_until_ready(out)

    ref = gat_encoder_ref(x, edge_index, params)
    # Tolerance accounts for bf16 projection / aggregation / bf16 intermediate (f32 ref).
    np.testing.assert_allclose(np.asarray(out), np.asarray(ref), rtol=5e-2, atol=5e-2)
    assert out.shape == (N, OUT_CH)
    assert bool(jnp.all(jnp.isfinite(out)))

    print("KERNEL_OK")
</pallas_src>

<mosaic_0001>
module attributes {stable_mosaic.version = 11 : i64} {
  func.func @_gat_attn_kernel(%arg0: i32, %arg1: i32, %arg2: memref<64x1xf32, #tpu.memory_space<vmem>>, %arg3: memref<1x128xf32, #tpu.memory_space<vmem>>, %arg4: memref<128x128xbf16, #tpu.memory_space<vmem>>, %arg5: memref<64x128xi8, #tpu.memory_space<vmem>>, %arg6: memref<1x128xf32, #tpu.memory_space<vmem>>, %arg7: memref<64x128xbf16, #tpu.memory_space<vmem>>, %arg8: memref<64x1xf32, #tpu.memory_space<vmem>>, %arg9: memref<64x1xf32, #tpu.memory_space<vmem>>, %arg10: memref<64x128xf32, #tpu.memory_space<vmem>>) attributes {dimension_semantics = [#tpu.dimension_semantics<parallel>, #tpu.dimension_semantics<arbitrary>], iteration_bounds = array<i64: 2, 1>, scalar_prefetch = 0 : i64, scratch_operands = 3 : i64, tpu.core_type = #tpu.core_type<tc>, window_params = [{transform_indices = @transform_0, window_bounds = array<i64: 64, 1>}, {transform_indices = @transform_1, window_bounds = array<i64: 1, 128>}, {transform_indices = @transform_2, window_bounds = array<i64: 128, 128>}, {transform_indices = @transform_3, window_bounds = array<i64: 64, 128>}, {pipeline_mode = #tpu.pipeline_mode<synchronous>, transform_indices = @transform_4, window_bounds = array<i64: 1, 128>}, {transform_indices = @transform_5, window_bounds = array<i64: 64, 128>}]} {
    %c0_i32 = arith.constant 0 : i32
    %0 = arith.cmpi eq, %arg1, %c0_i32 : i32
    %1 = arith.extui %0 : i1 to i32
    %c0_i32_0 = arith.constant 0 : i32
    %2 = arith.cmpi ne, %1, %c0_i32_0 : i32
    scf.if %2 {
      %cst_28 = arith.constant -1.000000e+30 : f32
      %47 = vector.broadcast %cst_28 : f32 to vector<64x1xf32>
      %c0_29 = arith.constant 0 : index
      %c0_30 = arith.constant 0 : index
      %48 = vector.load %arg8[%c0_29, %c0_30] : memref<64x1xf32, #tpu.memory_space<vmem>>, vector<64x1xf32>
      tpu.vector_store %arg8[%c0_29, %c0_30], %47 {strides = array<i32>} : memref<64x1xf32, #tpu.memory_space<vmem>>, vector<64x1xf32>,
      %cst_31 = arith.constant 0.000000e+00 : f32
      %49 = vector.broadcast %cst_31 : f32 to vector<64x1xf32>
      %c0_32 = arith.constant 0 : index
      %c0_33 = arith.constant 0 : index
      %50 = vector.load %arg9[%c0_32, %c0_33] : memref<64x1xf32, #tpu.memory_space<vmem>>, vector<64x1xf32>
      tpu.vector_store %arg9[%c0_32, %c0_33], %49 {strides = array<i32>} : memref<64x1xf32, #tpu.memory_space<vmem>>, vector<64x1xf32>,
      %cst_34 = arith.constant 0.000000e+00 : f32
      %51 = vector.broadcast %cst_34 : f32 to vector<64x128xf32>
      %c0_35 = arith.constant 0 : index
      %c0_36 = arith.constant 0 : index
      %52 = vector.load %arg10[%c0_35, %c0_36] : memref<64x128xf32, #tpu.memory_space<vmem>>, vector<64x128xf32>
      tpu.vector_store %arg10[%c0_35, %c0_36], %51 {strides = array<i32>} : memref<64x128xf32, #tpu.memory_space<vmem>>, vector<64x128xf32>,
    } else {
    }
    %c0 = arith.constant 0 : index
    %c0_1 = arith.constant 0 : index
    %3 = vector.load %arg5[%c0, %c0_1] : memref<64x128xi8, #tpu.memory_space<vmem>>, vector<64x128xi8>
    %c0_i8 = arith.constant 0 : i8
    %4 = vector.broadcast %c0_i8 : i8 to vector<64x128xi8>
    %5 = arith.cmpi ne, %3, %4 : vector<64x128xi8>
    %c0_2 = arith.constant 0 : index
    %c0_3 = arith.constant 0 : index
    %6 = vector.load %arg2[%c0_2, %c0_3] : memref<64x1xf32, #tpu.memory_space<vmem>>, vector<64x1xf32>
    %c0_4 = arith.constant 0 : index
    %c0_5 = arith.constant 0 : index
    %7 = vector.load %arg3[%c0_4, %c0_5] : memref<1x128xf32, #tpu.memory_space<vmem>>, vector<1x128xf32>
    %8 = vector.broadcast %6 : vector<64x1xf32> to vector<64x128xf32>
    %9 = vector.broadcast %7 : vector<1x128xf32> to vector<64x128xf32>
    %10 = arith.addf %8, %9 : vector<64x128xf32>
    %cst = arith.constant 0.000000e+00 : f32
    %11 = vector.broadcast %cst : f32 to vector<64x128xf32>
    %12 = arith.cmpf ogt, %10, %11 : vector<64x128xf32>
    %cst_6 = arith.constant 2.000000e-01 : f32
    %13 = vector.broadcast %cst_6 : f32 to vector<64x128xf32>
    %14 = arith.mulf %13, %10 : vector<64x128xf32>
    %15 = arith.select %12, %10, %14 : vector<64x128xi1>, vector<64x128xf32>
    %cst_7 = arith.constant -1.000000e+30 : f32
    %16 = vector.broadcast %cst_7 : f32 to vector<64x128xf32>
    %17 = arith.select %5, %15, %16 : vector<64x128xi1>, vector<64x128xf32>
    %c0_8 = arith.constant 0 : index
    %c0_9 = arith.constant 0 : index
    %18 = vector.load %arg8[%c0_8, %c0_9] : memref<64x1xf32, #tpu.memory_space<vmem>>, vector<64x1xf32>
    %cst_10 = arith.constant dense<0xFF800000> : vector<64xf32>
    %19 = vector.multi_reduction <maximumf>, %17, %cst_10 [1] : vector<64x128xf32> to vector<64xf32>
    %20 = vector.shape_cast %19 : vector<64xf32> to vector<64x1xf32>
    %21 = arith.maximumf %18, %20 : vector<64x1xf32>
    %22 = arith.subf %18, %21 : vector<64x1xf32>
    %23 = math.exp %22 : vector<64x1xf32>
    %24 = vector.broadcast %21 : vector<64x1xf32> to vector<64x128xf32>
    %25 = arith.subf %17, %24 : vector<64x128xf32>
    %26 = math.exp %25 : vector<64x128xf32>
    %cst_11 = arith.constant 0.000000e+00 : f32
    %27 = vector.broadcast %cst_11 : f32 to vector<64x128xf32>
    %28 = arith.select %5, %26, %27 : vector<64x128xi1>, vector<64x128xf32>
    %c0_12 = arith.constant 0 : index
    %c0_13 = arith.constant 0 : index
    %29 = vector.load %arg9[%c0_12, %c0_13] : memref<64x1xf32, #tpu.memory_space<vmem>>, vector<64x1xf32>
    %30 = arith.mulf %23, %29 : vector<64x1xf32>
    %cst_14 = arith.constant dense<0.000000e+00> : vector<64xf32>
    %31 = vector.multi_reduction <add>, %28, %cst_14 [1] : vector<64x128xf32> to vector<64xf32>
    %32 = vector.shape_cast %31 : vector<64xf32> to vector<64x1xf32>
    %33 = arith.addf %30, %32 : vector<64x1xf32>
    %c0_15 = arith.constant 0 : index
    %c0_16 = arith.constant 0 : index
    %34 = vector.load %arg9[%c0_15, %c0_16] : memref<64x1xf32, #tpu.memory_space<vmem>>, vector<64x1xf32>
    tpu.vector_store %arg9[%c0_15, %c0_16], %33 {strides = array<i32>} : memref<64x1xf32, #tpu.memory_space<vmem>>, vector<64x1xf32>,
    %c0_17 = arith.constant 0 : index
    %c0_18 = arith.constant 0 : index
    %35 = vector.load %arg10[%c0_17, %c0_18] : memref<64x128xf32, #tpu.memory_space<vmem>>, vector<64x128xf32>
    %36 = vector.broadcast %23 : vector<64x1xf32> to vector<64x128xf32>
    %37 = arith.mulf %36, %35 : vector<64x128xf32>
    %38 = arith.truncf %28 : vector<64x128xf32> to vector<64x128xbf16>
    %c0_19 = arith.constant 0 : index
    %c0_20 = arith.constant 0 : index
    %39 = vector.load %arg4[%c0_19, %c0_20] : memref<128x128xbf16, #tpu.memory_space<vmem>>, vector<128x128xbf16>
    %cst_21 = arith.constant dense<0.000000e+00> : vector<64x128xf32>
    %40 = tpu.matmul %38, %39, %cst_21 {dimension_numbers = #tpu.dot_dimension_numbers<[1], [0], [0], [1], [0, 0, 1, 1], [], []>} : vector<64x128xbf16>, vector<128x128xbf16>, vector<64x128xf32> -> vector<64x128xf32>
    %41 = arith.addf %37, %40 : vector<64x128xf32>
    %c0_22 = arith.constant 0 : index
    %c0_23 = arith.constant 0 : index
    %42 = vector.load %arg10[%c0_22, %c0_23] : memref<64x128xf32, #tpu.memory_space<vmem>>, vector<64x128xf32>
    tpu.vector_store %arg10[%c0_22, %c0_23], %41 {strides = array<i32>} : memref<64x128xf32, #tpu.memory_space<vmem>>, vector<64x128xf32>,
    %c0_24 = arith.constant 0 : index
    %c0_25 = arith.constant 0 : index
    %43 = vector.load %arg8[%c0_24, %c0_25] : memref<64x1xf32, #tpu.memory_space<vmem>>, vector<64x1xf32>
    tpu.vector_store %arg8[%c0_24, %c0_25], %21 {strides = array<i32>} : memref<64x1xf32, #tpu.memory_space<vmem>>, vector<64x1xf32>,
    %c0_i32_26 = arith.constant 0 : i32
    %44 = arith.cmpi eq, %arg1, %c0_i32_26 : i32
    %45 = arith.extui %44 : i1 to i32
    %c0_i32_27 = arith.constant 0 : i32
    %46 = arith.cmpi ne, %45, %c0_i32_27 : i32
    scf.if %46 {
      %c0_28 = arith.constant 0 : index
      %c0_29 = arith.constant 0 : index
      %47 = vector.load %arg10[%c0_28, %c0_29] : memref<64x128xf32, #tpu.memory_space<vmem>>, vector<64x128xf32>
      %c0_30 = arith.constant 0 : index
      %c0_31 = arith.constant 0 : index
      %48 = vector.load %arg9[%c0_30, %c0_31] : memref<64x1xf32, #tpu.memory_space<vmem>>, vector<64x1xf32>
      %49 = tpu.reciprocal %48 {approx = true} : vector<64x1xf32> -> vector<64x1xf32>
      %50 = vector.broadcast %49 : vector<64x1xf32> to vector<64x128xf32>
      %51 = arith.mulf %47, %50 : vector<64x128xf32>
      %c0_32 = arith.constant 0 : index
      %c0_33 = arith.constant 0 : index
      %52 = vector.load %arg6[%c0_32, %c0_33] : memref<1x128xf32, #tpu.memory_space<vmem>>, vector<1x128xf32>
      %53 = vector.broadcast %52 : vector<1x128xf32> to vector<64x128xf32>
      %54 = arith.addf %51, %53 : vector<64x128xf32>
      %cst_34 = arith.constant 0.000000e+00 : f32
      %55 = vector.broadcast %cst_34 : f32 to vector<64x128xf32>
      %56 = arith.cmpf ogt, %54, %55 : vector<64x128xf32>
      %cst_35 = arith.constant 0.000000e+00 : f32
      %57 = vector.broadcast %cst_35 : f32 to vector<64x128xf32>
      %58 = arith.minimumf %54, %57 : vector<64x128xf32>
      %59 = math.exp %58 : vector<64x128xf32>
      %cst_36 = arith.constant 1.000000e+00 : f32
      %60 = vector.broadcast %cst_36 : f32 to vector<64x128xf32>
      %61 = arith.subf %59, %60 : vector<64x128xf32>
      %62 = arith.select %56, %54, %61 : vector<64x128xi1>, vector<64x128xf32>
      %63 = arith.truncf %62 : vector<64x128xf32> to vector<64x128xbf16>
      %c0_37 = arith.constant 0 : index
      %c0_38 = arith.constant 0 : index
      %64 = vector.load %arg7[%c0_37, %c0_38] : memref<64x128xbf16, #tpu.memory_space<vmem>>, vector<64x128xbf16>
      tpu.vector_store %arg7[%c0_37, %c0_38], %63 {strides = array<i32>} : memref<64x128xbf16, #tpu.memory_space<vmem>>, vector<64x128xbf16>,
    } else {
    }
    return
  }
  func.func @transform_0(%arg0: i32, %arg1: i32) -> (i32, i32) {
    %c0_i32 = arith.constant 0 : i32
    %c0_i32_0 = arith.constant 0 : i32
    return %arg0, %c0_i32 : i32, i32
  }
  func.func @transform_1(%arg0: i32, %arg1: i32) -> (i32, i32) {
    %c0_i32 = arith.constant 0 : i32
    %c0_i32_0 = arith.constant 0 : i32
    return %c0_i32, %arg1 : i32, i32
  }
  func.func @transform_2(%arg0: i32, %arg1: i32) -> (i32, i32) {
    %c0_i32 = arith.constant 0 : i32
    %c0_i32_0 = arith.constant 0 : i32
    return %arg1, %c0_i32 : i32, i32
  }
  func.func @transform_3(%arg0: i32, %arg1: i32) -> (i32, i32) {
    %c0_i32 = arith.constant 0 : i32
    return %arg0, %arg1 : i32, i32
  }
  func.func @transform_4(%arg0: i32, %arg1: i32) -> (i32, i32) {
    %c0_i32 = arith.constant 0 : i32
    %c0_i32_0 = arith.constant 0 : i32
    %c0_i32_1 = arith.constant 0 : i32
    return %c0_i32, %c0_i32_0 : i32, i32
  }
  func.func @transform_5(%arg0: i32, %arg1: i32) -> (i32, i32) {
    %c0_i32 = arith.constant 0 : i32
    %c0_i32_0 = arith.constant 0 : i32
    return %arg0, %c0_i32 : i32, i32
  }
}

</mosaic_0001>

<llo_original>
// kernel: tpu_custom_call.1
$region0: #{tpu_custom_call.1}
  #allocation0 [shape = 'u32[]', space=smem, size = 0x4, offset = 0x4, fixed_abs, tag = 'smem constant byte address 0x4 - core index']
  #allocation1 [shape = 'u32[144,128]{1,0:T(1,128)}', space=vmem, size = 0x12000, scoped, tag = 'internal scratch']
  #allocation2 [shape = 'f32[64,1]{1,0:T(8,128)}', space=vmem, size = 0x8000, scoped, tag = 'scratch operand']
  #allocation3 [shape = 'f32[64,1]{1,0:T(8,128)}', space=vmem, size = 0x8000, scoped, tag = 'scratch operand']
  #allocation4 [shape = 'f32[64,128]{1,0:T(8,128)}', space=vmem, size = 0x8000, scoped, tag = 'scratch operand']
  %s0 = inlined_call_operand.vmem [shape: f32[128,1], index: 0, kind: input, shape index: {}]
  %s1 = inlined_call_operand.vmem [shape: f32[1,128], index: 1, kind: input, shape index: {}]
  %s2 = inlined_call_operand.vmem [shape: bf16[128,128], index: 2, kind: input, shape index: {}]
  %s3 = inlined_call_operand.vmem [shape: s8[128,128], index: 3, kind: input, shape index: {}]
  %s4 = inlined_call_operand.vmem [shape: f32[1,128], index: 4, kind: input, shape index: {}]
  %s5 = inlined_call_operand.hbm [shape: bf16[128,128], index: 5, kind: output, shape index: {}]
  %s6 = sld [smem:[#allocation0]]
  $region61: #{tpu_custom_call.1} parent=0
    _
  %s8 = ssub.s32 1, %s6
  %s9 = scalar_select 0, %s8, %s6
  $region1: #{tpu_custom_call.1} parent=0
    #allocation5 [shape = 'u8[32768]{0}', space=vmem, size = 0x8000, scoped, tag = 'output window, operand 0']
    #allocation6 [shape = 's32[2]{0}', space=sflag, size = 0x8, scoped, tag = 'scoped memory for tpu_custom_call.1']
    %10 = vsyncpa [#allocation6], 0
    %s11 = scalar_lea.sflag [#allocation6], 1
    %12 = vsyncpa %s11, 0
    loop: start=0, step=1, limit=4
    $region2: #{tpu_custom_call.1} parent=1 // loop_pre_header
      _
    $region3: #{tpu_custom_call.1} parent=1 // loop_header
      %s14 = sphi 0, %s18
      %p15 = scmp.ge.s32.totalorder %s14, 4
      %s21 = sphi 0, %s33
      %s22 = sphi 0, %s29
      %s23 = sphi 0, %s21
      %s24 = sphi 0, %s22
      %s25 = sphi 0, %s23
      %s26 = sphi 0, %s24
      %s36 = sphi 0, %s38
      %s39 = sphi 0, %s36
      %s40 = sphi 0, %s39
      %s56 = sphi 0, %s40
      %s62 = sphi 0, %s64
      %s65 = sphi 0, %s62
      %s66 = sphi 0, %s65
      %s82 = sphi 0, %s66
      %s88 = sphi 0, %s90
      %s91 = sphi 0, %s88
      %s92 = sphi 0, %s91
      %s108 = sphi 0, %s92
      %s116 = sphi 0, %s118
      %s119 = sphi 0, %s116
      %s120 = sphi 0, %s119
      %s136 = sphi 0, %s120
      %s140 = sphi 0, %s140
      %s142 = sphi 0, %s140
      %s143 = sphi 0, %s142
      %s157 = sphi 0, %s143
      %s163 = sphi 0, %s165
      %s166 = sphi 0, %s163
      %s167 = sphi 0, %s166
      %s183 = sphi 0, %s167
    $region4: #{tpu_custom_call.1} parent=1 // loop_header_branch
      %17 = sbr.rel (%p15) target = $region8
    $region5: #{tpu_custom_call.1} parent=1 // loop_body
      %s19 = ssub.s32 %s14, 1
      %s20 = ssub.s32 %s14, 2
      %s27 = sadd.s32 1, %s22
      %p28 = scmp.ge.s32.totalorder %s27, 1
      %s29 = scalar_select %p28, 0, %s27
      %s30 = sadd.s32 1, %s21
      %s31 = scalar_select %p28, %s30, %s21
      %p32 = scmp.ge.s32.totalorder %s31, 2
      %s33 = scalar_select %p32, 0, %s31
      %s34 = ssub.s32 %s21, %s33
      %p35 = scmp.eq.s32.totalorder %s34, 0
      %s37 = sadd.s32 %s36, 1
      %s38 = scalar_select %p35, %s36, %s37
      %p41 = pneg %p35
      %p42 = scmp.eq.s32.totalorder %s14, 1
      %p43 = por %p41, %p42
      %p44 = scmp.ne.s32.totalorder %s36, %s39
      %p45 = scmp.eq.s32.totalorder %s14, 0
      %p46 = por %p44, %p45
      %p47 = scmp.ne.s32.totalorder %s36, %s39
      %p48 = scmp.eq.s32.totalorder %s19, 1
      %p49 = por %p47, %p48
      %p50 = scmp.ne.s32.totalorder %s39, %s40
      %p51 = scmp.eq.s32.totalorder %s19, 0
      %p52 = por %p50, %p51
      %p53 = scmp.ne.s32.totalorder %s39, %s40
      %p54 = scmp.eq.s32.totalorder %s20, 1
      %p55 = por %p53, %p54
      %p57 = scmp.ne.s32.totalorder %s40, %s56
      %p58 = scmp.eq.s32.totalorder %s20, 0
      %p59 = por %p57, %p58
      %s60 = ssub.s32 %s22, %s29
      %p61 = scmp.eq.s32.totalorder %s60, 0
      %s63 = sadd.s32 %s62, 1
      %s64 = scalar_select %p61, %s62, %s63
      %p67 = pneg %p61
      %p68 = scmp.eq.s32.totalorder %s14, 1
      %p69 = por %p67, %p68
      %p70 = scmp.ne.s32.totalorder %s62, %s65
      %p71 = scmp.eq.s32.totalorder %s14, 0
      %p72 = por %p70, %p71
      %p73 = scmp.ne.s32.totalorder %s62, %s65
      %p74 = scmp.eq.s32.totalorder %s19, 1
      %p75 = por %p73, %p74
      %p76 = scmp.ne.s32.totalorder %s65, %s66
      %p77 = scmp.eq.s32.totalorder %s19, 0
      %p78 = por %p76, %p77
      %p79 = scmp.ne.s32.totalorder %s65, %s66
      %p80 = scmp.eq.s32.totalorder %s20, 1
      %p81 = por %p79, %p80
      %p83 = scmp.ne.s32.totalorder %s66, %s82
      %p84 = scmp.eq.s32.totalorder %s20, 0
      %p85 = por %p83, %p84
      %s86 = ssub.s32 %s22, %s29
      %p87 = scmp.eq.s32.totalorder %s86, 0
      %s89 = sadd.s32 %s88, 1
      %s90 = scalar_select %p87, %s88, %s89
      %p93 = pneg %p87
      %p94 = scmp.eq.s32.totalorder %s14, 1
      %p95 = por %p93, %p94
      %p96 = scmp.ne.s32.totalorder %s88, %s91
      %p97 = scmp.eq.s32.totalorder %s14, 0
      %p98 = por %p96, %p97
      %p99 = scmp.ne.s32.totalorder %s88, %s91
      %p100 = scmp.eq.s32.totalorder %s19, 1
      %p101 = por %p99, %p100
      %p102 = scmp.ne.s32.totalorder %s91, %s92
      %p103 = scmp.eq.s32.totalorder %s19, 0
      %p104 = por %p102, %p103
      %p105 = scmp.ne.s32.totalorder %s91, %s92
      %p106 = scmp.eq.s32.totalorder %s20, 1
      %p107 = por %p105, %p106
      %p109 = scmp.ne.s32.totalorder %s92, %s108
      %p110 = scmp.eq.s32.totalorder %s20, 0
      %p111 = por %p109, %p110
      %s112 = ssub.s32 %s21, %s33
      %s113 = ssub.s32 %s22, %s29
      %s114 = sor.u32 %s112, %s113
      %p115 = scmp.eq.s32.totalorder %s114, 0
      %s117 = sadd.s32 %s116, 1
      %s118 = scalar_select %p115, %s116, %s117
      %p121 = pneg %p115
      %p122 = scmp.eq.s32.totalorder %s14, 1
      %p123 = por %p121, %p122
      %p124 = scmp.ne.s32.totalorder %s116, %s119
      %p125 = scmp.eq.s32.totalorder %s14, 0
      %p126 = por %p124, %p125
      %p127 = scmp.ne.s32.totalorder %s116, %s119
      %p128 = scmp.eq.s32.totalorder %s19, 1
      %p129 = por %p127, %p128
      %p130 = scmp.ne.s32.totalorder %s119, %s120
      %p131 = scmp.eq.s32.totalorder %s19, 0
      %p132 = por %p130, %p131
      %p133 = scmp.ne.s32.totalorder %s119, %s120
      %p134 = scmp.eq.s32.totalorder %s20, 1
      %p135 = por %p133, %p134
      %p137 = scmp.ne.s32.totalorder %s120, %s136
      %p138 = scmp.eq.s32.totalorder %s20, 0
      %p139 = por %p137, %p138
      %s141 = sadd.s32 %s140, 1
      %p144 = scmp.eq.s32.totalorder %s14, 1
      %p145 = scmp.ne.s32.totalorder %s140, %s142
      %p146 = scmp.eq.s32.totalorder %s14, 0
      %p147 = por %p145, %p146
      %p148 = scmp.ne.s32.totalorder %s140, %s142
      %p149 = scmp.eq.s32.totalorder %s19, 1
      %p150 = por %p148, %p149
      %p151 = scmp.ne.s32.totalorder %s142, %s143
      %p152 = scmp.eq.s32.totalorder %s19, 0
      %p153 = por %p151, %p152
      %p154 = scmp.ne.s32.totalorder %s142, %s143
      %p155 = scmp.eq.s32.totalorder %s20, 1
      %p156 = por %p154, %p155
      %p158 = scmp.ne.s32.totalorder %s143, %s157
      %p159 = scmp.eq.s32.totalorder %s20, 0
      %p160 = por %p158, %p159
      %s161 = ssub.s32 %s21, %s33
      %p162 = scmp.eq.s32.totalorder %s161, 0
      %s164 = sadd.s32 %s163, 1
      %s165 = scalar_select %p162, %s163, %s164
      %p168 = pneg %p162
      %p169 = scmp.eq.s32.totalorder %s14, 1
      %p170 = por %p168, %p169
      %p171 = scmp.ne.s32.totalorder %s163, %s166
      %p172 = scmp.eq.s32.totalorder %s14, 0
      %p173 = por %p171, %p172
      %p174 = scmp.ne.s32.totalorder %s163, %s166
      %p175 = scmp.eq.s32.totalorder %s19, 1
      %p176 = por %p174, %p175
      %p177 = scmp.ne.s32.totalorder %s166, %s167
      %p178 = scmp.eq.s32.totalorder %s19, 0
      %p179 = por %p177, %p178
      %p180 = scmp.ne.s32.totalorder %s166, %s167
      %p181 = scmp.eq.s32.totalorder %s20, 1
      %p182 = por %p180, %p181
      %p184 = scmp.ne.s32.totalorder %s167, %s183
      %p185 = scmp.eq.s32.totalorder %s20, 0
      %p186 = por %p184, %p185
      %p187 = scmp.le.s32.totalorder 1, %s14
      %p188 = scmp.lt.s32.totalorder %s14, 3
      %p189 = pnand %p187, %p188
      %p190 = pneg %p189
      // Predicated region
      $region9: #{tpu_custom_call.1} parent=5 // pred_check
        _
      $region10: #{tpu_custom_call.1} parent=5 // pred_check_branch
        %192 = sbr.rel (%p189) target = $region12
      $region11: #{tpu_custom_call.1} parent=5 // pred_region
        %s193 = ssub.s32 %s14, 1
        // Predicated region
        $region13: #{tpu_custom_call.1} parent=11 // pred_check
          %p194 = pneg %p78
        $region14: #{tpu_custom_call.1} parent=11 // pred_check_branch
          %196 = sbr.rel (%p194) target = $region16
        $region15: #{tpu_custom_call.1} parent=11 // pred_region
          %p197 = scmp.lt.s32.totalorder %s24, 0
          %s198 = scalar_select %p197, %s24, 0
          %s199 = scalar_lea.vmem %s1, %s198
        $region16: #{tpu_custom_call.1} parent=11 // pred_fallthru
          _
        // Predicated region
        $region17: #{tpu_custom_call.1} parent=11 // pred_check
          %p200 = pneg %p104
        $region18: #{tpu_custom_call.1} parent=11 // pred_check_branch
          %202 = sbr.rel (%p200) target = $region20
        $region19: #{tpu_custom_call.1} parent=11 // pred_region
          %s203 = smul.u32 16, %s24
          %p204 = scmp.lt.s32.totalorder %s203, 15
          %s205 = scalar_select %p204, %s203, 15
          %s206 = smul.addr %s205, 4
          %s207 = scalar_lea.vmem %s2, %s206
          %s208 = smul.u32 16, %s24
        $region20: #{tpu_custom_call.1} parent=11 // pred_fallthru
          _
        // Predicated region
        $region21: #{tpu_custom_call.1} parent=11 // pred_check
          %p209 = pneg %p153
        $region22: #{tpu_custom_call.1} parent=11 // pred_check_branch
          %211 = sbr.rel (%p209) target = $region24
        $region23: #{tpu_custom_call.1} parent=11 // pred_region
          _
        $region24: #{tpu_custom_call.1} parent=11 // pred_fallthru
          _
      $region12: #{tpu_custom_call.1} parent=5 // pred_fallthru
        _
      %p212 = scmp.lt.s32.totalorder %s14, 2
      // Predicated region
      $region25: #{tpu_custom_call.1} parent=5 // pred_check
        %p213 = pneg %p212
      $region26: #{tpu_custom_call.1} parent=5 // pred_check_branch
        %215 = sbr.rel (%p213) target = $region28
      $region27: #{tpu_custom_call.1} parent=5 // pred_region
        // Predicated region
        $region29: #{tpu_custom_call.1} parent=27 // pred_check
          %p216 = pneg %p46
        $region30: #{tpu_custom_call.1} parent=27 // pred_check_branch
          %218 = sbr.rel (%p216) target = $region32
        $region31: #{tpu_custom_call.1} parent=27 // pred_region
          %s219 = smul.u32 8, %s21
          %p220 = scmp.lt.s32.totalorder %s219, 15
          %s221 = scalar_select %p220, %s219, 15
          %s222 = smul.addr %s221, 8
          %s223 = scalar_lea.vmem %s0, %s222
          %s224 = smul.u32 8, %s21
        $region32: #{tpu_custom_call.1} parent=27 // pred_fallthru
          _
        // Predicated region
        $region33: #{tpu_custom_call.1} parent=27 // pred_check
          %p225 = pneg %p126
        $region34: #{tpu_custom_call.1} parent=27 // pred_check_branch
          %227 = sbr.rel (%p225) target = $region36
        $region35: #{tpu_custom_call.1} parent=27 // pred_region
          %s228 = smul.u32 2, %s21
          %p229 = scmp.lt.s32.totalorder %s228, 3
          %s230 = scalar_select %p229, %s228, 3
          %p231 = scmp.lt.s32.totalorder %s22, 0
          %s232 = scalar_select %p231, %s22, 0
          %s233 = sadd.s32 %s232, %s230
          %s234 = smul.addr %s233, 8
          %s235 = scalar_lea.vmem %s3, %s234
          %s236 = smul.u32 2, %s21
        $region36: #{tpu_custom_call.1} parent=27 // pred_fallthru
          _
      $region28: #{tpu_custom_call.1} parent=5 // pred_fallthru
        _
      %p237 = scmp.le.s32.totalorder 1, %s14
      %p238 = scmp.lt.s32.totalorder %s14, 3
      %p239 = pnand %p237, %p238
      %p240 = pneg %p239
      // Predicated region
      $region37: #{tpu_custom_call.1} parent=5 // pred_check
        _
      $region38: #{tpu_custom_call.1} parent=5 // pred_check_branch
        %242 = sbr.rel (%p239) target = $region40
      $region39: #{tpu_custom_call.1} parent=5 // pred_region
        %s243 = ssub.s32 %s14, 1
        %s244 = smul.u32 8, %s23
        %p245 = scmp.lt.s32.totalorder %s244, 15
        %s246 = scalar_select %p245, %s244, 15
        %s247 = smul.addr %s246, 8
        %s248 = scalar_lea.vmem %s0, %s247
        %p249 = pneg %p52
        %p250 = pneg %p49
        %p251 = scmp.lt.s32.totalorder %s24, 0
        %s252 = scalar_select %p251, %s24, 0
        %s253 = scalar_lea.vmem %s1, %s252
        %p254 = pneg %p78
        %p255 = pneg %p75
        %s256 = smul.u32 16, %s24
        %p257 = scmp.lt.s32.totalorder %s256, 15
        %s258 = scalar_select %p257, %s256, 15
        %s259 = smul.addr %s258, 4
        %s260 = scalar_lea.vmem %s2, %s259
        %p261 = pneg %p104
        %p262 = pneg %p101
        %s263 = smul.u32 2, %s23
        %p264 = scmp.lt.s32.totalorder %s263, 3
        %s265 = scalar_select %p264, %s263, 3
        %p266 = scmp.lt.s32.totalorder %s24, 0
        %s267 = scalar_select %p266, %s24, 0
        %s268 = sadd.s32 %s267, %s265
        %s269 = smul.addr %s268, 8
        %s270 = scalar_lea.vmem %s3, %s269
        %p271 = pneg %p132
        %p272 = pneg %p129
        %p273 = pneg %p153
        %p274 = pneg %p150
        %p275 = pneg %p179
        %p276 = pneg %p176
        %s277 = sand.u32 %s166, 1
        %s278 = scalar_lea.sflag [#allocation6], %s277
        %s279 = sand.u32 %s166, 1
        %s280 = smul.addr %s279, 32
        %s281 = scalar_lea.vmem [#allocation5], %s280
        %s282 = smul.u32 8, %s23
        %p283 = scmp.lt.s32.totalorder %s282, 15
        %s284 = scalar_select %p283, %s282, 15
        %s285 = smul.addr %s284, 8
        %s286 = scalar_lea.vmem %s0, %s285
        %s287 = smul.u32 8, %s23
        %p288 = scmp.lt.s32.totalorder %s24, 0
        %s289 = scalar_select %p288, %s24, 0
        %s290 = scalar_lea.vmem %s1, %s289
        %s291 = smul.u32 16, %s24
        %p292 = scmp.lt.s32.totalorder %s291, 15
        %s293 = scalar_select %p292, %s291, 15
        %s294 = smul.addr %s293, 4
        %s295 = scalar_lea.vmem %s2, %s294
        %s296 = smul.u32 16, %s24
        %s297 = smul.u32 2, %s23
        %p298 = scmp.lt.s32.totalorder %s297, 3
        %s299 = scalar_select %p298, %s297, 3
        %p300 = scmp.lt.s32.totalorder %s24, 0
        %s301 = scalar_select %p300, %s24, 0
        %s302 = sadd.s32 %s301, %s299
        %s303 = smul.addr %s302, 8
        %s304 = scalar_lea.vmem %s3, %s303
        %s305 = smul.u32 2, %s23
        %s306 = smul.u32 8, %s23
        %p310 = scmp.eq.s32.totalorder %s24, 0
        // Predicated region
        $region41: #{tpu_custom_call.1} parent=39 // pred_check
          %p311 = pneg %p310
        $region42: #{tpu_custom_call.1} parent=39 // pred_check_branch
          %313 = sbr.rel (%p311) target = $region44
        $region43: #{tpu_custom_call.1} parent=39 // pred_region
          %vm314 = vcmask 7168
          %315 = vst.msk [vmem:[#allocation2] sm:$0xff] %vm314, -1e+30
          %316 = vst.msk [vmem:[#allocation2 + $0x8] sm:$0xff] %vm314, -1e+30
          %317 = vst.msk [vmem:[#allocation2 + $0x10] sm:$0xff] %vm314, -1e+30
          %318 = vst.msk [vmem:[#allocation2 + $0x18] sm:$0xff] %vm314, -1e+30
          %319 = vst.msk [vmem:[#allocation2 + $0x20] sm:$0xff] %vm314, -1e+30
          %320 = vst.msk [vmem:[#allocation2 + $0x28] sm:$0xff] %vm314, -1e+30
          %321 = vst.msk [vmem:[#allocation2 + $0x30] sm:$0xff] %vm314, -1e+30
          %322 = vst.msk [vmem:[#allocation2 + $0x38] sm:$0xff] %vm314, -1e+30
          %323 = vst.msk [vmem:[#allocation3] sm:$0xff] %vm314, 0.0
          %324 = vst.msk [vmem:[#allocation3 + $0x8] sm:$0xff] %vm314, 0.0
          %325 = vst.msk [vmem:[#allocation3 + $0x10] sm:$0xff] %vm314, 0.0
          %326 = vst.msk [vmem:[#allocation3 + $0x18] sm:$0xff] %vm314, 0.0
          %327 = vst.msk [vmem:[#allocation3 + $0x20] sm:$0xff] %vm314, 0.0
          %328 = vst.msk [vmem:[#allocation3 + $0x28] sm:$0xff] %vm314, 0.0
          %329 = vst.msk [vmem:[#allocation3 + $0x30] sm:$0xff] %vm314, 0.0
          %330 = vst.msk [vmem:[#allocation3 + $0x38] sm:$0xff] %vm314, 0.0
          %331 = vst [vmem:[#allocation4] sm:$0xff] 0.0
          %332 = vst [vmem:[#allocation4 + $0x8] sm:$0xff] 0.0
          %333 = vst [vmem:[#allocation4 + $0x10] sm:$0xff] 0.0
          %334 = vst [vmem:[#allocation4 + $0x18] sm:$0xff] 0.0
          %335 = vst [vmem:[#allocation4 + $0x20] sm:$0xff] 0.0
          %336 = vst [vmem:[#allocation4 + $0x28] sm:$0xff] 0.0
          %337 = vst [vmem:[#allocation4 + $0x30] sm:$0xff] 0.0
          %338 = vst [vmem:[#allocation4 + $0x38] sm:$0xff] 0.0
        $region44: #{tpu_custom_call.1} parent=39 // pred_fallthru
          _
        %v339 = vld [vmem:[%s304] sm:$0xff]
        %v340 = vld [vmem:[%s304 + $0x8] sm:$0xff]
        %vm341 = vnez %v339
        %vm342 = vnez %v340
        %v343 = vld [vmem:[%s286] sm:$0xff]
        %v344 = vld [vmem:[%s286 + $0x8] sm:$0xff]
        %v345 = vld [vmem:[%s286 + $0x10] sm:$0xff]
        %v346 = vld [vmem:[%s286 + $0x18] sm:$0xff]
        %v347 = vld [vmem:[%s286 + $0x20] sm:$0xff]
        %v348 = vld [vmem:[%s286 + $0x28] sm:$0xff]
        %v349 = vld [vmem:[%s286 + $0x30] sm:$0xff]
        %v350 = vld [vmem:[%s286 + $0x38] sm:$0xff]
        %v351 = vld [vmem:[%s290] sm:$0x1]
        %353 = vset.pattern.permute.xlu0 0
        %354 = vperm.xlu0 %353, %v343
        %v355 = vpop.permute.xlu0 %354
        %358 = vset.pattern.permute.xlu0 0
        %359 = vperm.xlu0 %358, %v344
        %v360 = vpop.permute.xlu0 %359
        %363 = vset.pattern.permute.xlu0 0
        %364 = vperm.xlu0 %363, %v345
        %v365 = vpop.permute.xlu0 %364
        %368 = vset.pattern.permute.xlu0 0
        %369 = vperm.xlu0 %368, %v346
        %v370 = vpop.permute.xlu0 %369
        %373 = vset.pattern.permute.xlu0 0
        %374 = vperm.xlu0 %373, %v347
        %v375 = vpop.permute.xlu0 %374
        %378 = vset.pattern.permute.xlu0 0
        %379 = vperm.xlu0 %378, %v348
        %v380 = vpop.permute.xlu0 %379
        %383 = vset.pattern.permute.xlu0 0
        %384 = vperm.xlu0 %383, %v349
        %v385 = vpop.permute.xlu0 %384
        %388 = vset.pattern.permute.xlu0 0
        %389 = vperm.xlu0 %388, %v350
        %v390 = vpop.permute.xlu0 %389
        %v393 = vlaneseq
        %v394 = vshrl.u32 %v393, 7
        %v395 = vsub.s32 0, %v394
        %v396 = vrot.slane %v351, %v395
        %v398 = vadd.f32 %v355, %v396
        %v399 = vadd.f32 %v360, %v396
        %v400 = vadd.f32 %v365, %v396
        %v401 = vadd.f32 %v370, %v396
        %v402 = vadd.f32 %v375, %v396
        %v403 = vadd.f32 %v380, %v396
        %v404 = vadd.f32 %v385, %v396
        %v405 = vadd.f32 %v390, %v396
        %vm406 = vcmp.gt.f32.partialorder %v398, 0.0
        %vm407 = vcmp.gt.f32.partialorder %v399, 0.0
        %vm408 = vcmp.gt.f32.partialorder %v400, 0.0
        %vm409 = vcmp.gt.f32.partialorder %v401, 0.0
        %vm410 = vcmp.gt.f32.partialorder %v402, 0.0
        %vm411 = vcmp.gt.f32.partialorder %v403, 0.0
        %vm412 = vcmp.gt.f32.partialorder %v404, 0.0
        %vm413 = vcmp.gt.f32.partialorder %v405, 0.0
        %v414 = vmul.f32 %v398, 0.2
        %v415 = vmul.f32 %v399, 0.2
        %v416 = vmul.f32 %v400, 0.2
        %v417 = vmul.f32 %v401, 0.2
        %v418 = vmul.f32 %v402, 0.2
        %v419 = vmul.f32 %v403, 0.2
        %v420 = vmul.f32 %v404, 0.2
        %v421 = vmul.f32 %v405, 0.2
        %v422 = vsel %vm406, %v398, %v414
        %v423 = vsel %vm407, %v399, %v415
        %v424 = vsel %vm408, %v400, %v416
        %v425 = vsel %vm409, %v401, %v417
        %v426 = vsel %vm410, %v402, %v418
        %v427 = vsel %vm411, %v403, %v419
        %v428 = vsel %vm412, %v404, %v420
        %v429 = vsel %vm413, %v405, %v421
        %v430 = vsel %vm341, 16843009, 0
        %v431 = vsel %vm342, 16843009, 0
        %v432 = vunpack.c.0.s8 %v430
        %v433 = vunpack.c.1.s8 %v430
        %v434 = vunpack.c.2.s8 %v430
        %v435 = vunpack.c.3.s8 %v430
        %v436 = vunpack.c.0.s8 %v431
        %v437 = vunpack.c.1.s8 %v431
        %v438 = vunpack.c.2.s8 %v431
        %v439 = vunpack.c.3.s8 %v431
        %v440 = vpack.c.b16 %v432, %v432
        %v441 = vpack.c.b8 %v440, %v440
        %v442 = vpack.c.b16 %v433, %v433
        %v443 = vpack.c.b8 %v442, %v442
        %v444 = vpack.c.b16 %v434, %v434
        %v445 = vpack.c.b8 %v444, %v444
        %v446 = vpack.c.b16 %v435, %v435
        %v447 = vpack.c.b8 %v446, %v446
        %v448 = vpack.c.b16 %v436, %v436
        %v449 = vpack.c.b8 %v448, %v448
        %v450 = vpack.c.b16 %v437, %v437
        %v451 = vpack.c.b8 %v450, %v450
        %v452 = vpack.c.b16 %v438, %v438
        %v453 = vpack.c.b8 %v452, %v452
        %v454 = vpack.c.b16 %v439, %v439
        %v455 = vpack.c.b8 %v454, %v454
        %vm456 = vnez %v441
        %vm457 = vnez %v443
        %vm458 = vnez %v445
        %vm459 = vnez %v447
        %vm460 = vnez %v449
        %vm461 = vnez %v451
        %vm462 = vnez %v453
        %vm463 = vnez %v455
        %v464 = vsel %vm456, 16843009, 0
        %v465 = vsel %vm457, 16843009, 0
        %v466 = vsel %vm458, 16843009, 0
        %v467 = vsel %vm459, 16843009, 0
        %v468 = vsel %vm460, 16843009, 0
        %v469 = vsel %vm461, 16843009, 0
        %v470 = vsel %vm462, 16843009, 0
        %v471 = vsel %vm463, 16843009, 0
        %v472 = vunpack.c.0.s8 %v464
        %v473 = vunpack.c.0.s8 %v465
        %v474 = vunpack.c.0.s8 %v466
        %v475 = vunpack.c.0.s8 %v467
        %v476 = vunpack.c.0.s8 %v468
        %v477 = vunpack.c.0.s8 %v469
        %v478 = vunpack.c.0.s8 %v470
        %v479 = vunpack.c.0.s8 %v471
        %vm480 = vcmp.ne.s32.totalorder %v472, 0
        %vm481 = vcmp.ne.s32.totalorder %v473, 0
        %vm482 = vcmp.ne.s32.totalorder %v474, 0
        %vm483 = vcmp.ne.s32.totalorder %v475, 0
        %vm484 = vcmp.ne.s32.totalorder %v476, 0
        %vm485 = vcmp.ne.s32.totalorder %v477, 0
        %vm486 = vcmp.ne.s32.totalorder %v478, 0
        %vm487 = vcmp.ne.s32.totalorder %v479, 0
        %v488 = vsel %vm480, %v422, -1e+30
        %v489 = vsel %vm481, %v423, -1e+30
        %v490 = vsel %vm482, %v424, -1e+30
        %v491 = vsel %vm483, %v425, -1e+30
        %v492 = vsel %vm484, %v426, -1e+30
        %v493 = vsel %vm485, %v427, -1e+30
        %v494 = vsel %vm486, %v428, -1e+30
        %v495 = vsel %vm487, %v429, -1e+30
        %v496 = vld [vmem:[#allocation2] sm:$0xff]
        %v497 = vld [vmem:[#allocation2 + $0x8] sm:$0xff]
        %v498 = vld [vmem:[#allocation2 + $0x10] sm:$0xff]
        %v499 = vld [vmem:[#allocation2 + $0x18] sm:$0xff]
        %v500 = vld [vmem:[#allocation2 + $0x20] sm:$0xff]
        %v501 = vld [vmem:[#allocation2 + $0x28] sm:$0xff]
        %v502 = vld [vmem:[#allocation2 + $0x30] sm:$0xff]
        %v503 = vld [vmem:[#allocation2 + $0x38] sm:$0xff]
        %504 = vmax.xlane.f32.xlu0 %v488
        %v505 = vpop.xlane.xlu0 %504
        %506 = vmax.xlane.f32.xlu0 %v489
        %v507 = vpop.xlane.xlu0 %506
        %508 = vmax.xlane.f32.xlu0 %v490
        %v509 = vpop.xlane.xlu0 %508
        %510 = vmax.xlane.f32.xlu0 %v491
        %v511 = vpop.xlane.xlu0 %510
        %512 = vmax.xlane.f32.xlu0 %v492
        %v513 = vpop.xlane.xlu0 %512
        %514 = vmax.xlane.f32.xlu0 %v493
        %v515 = vpop.xlane.xlu0 %514
        %516 = vmax.xlane.f32.xlu0 %v494
        %v517 = vpop.xlane.xlu0 %516
        %518 = vmax.xlane.f32.xlu0 %v495
        %v519 = vpop.xlane.xlu0 %518
        %v520 = vmax.f32 %v496, %v505
        %v521 = vmax.f32 %v497, %v507
        %v522 = vmax.f32 %v498, %v509
        %v523 = vmax.f32 %v499, %v511
        %v524 = vmax.f32 %v500, %v513
        %v525 = vmax.f32 %v501, %v515
        %v526 = vmax.f32 %v502, %v517
        %v527 = vmax.f32 %v503, %v519
        %v528 = vsub.f32 %v496, %v520
        %v529 = vsub.f32 %v497, %v521
        %v530 = vsub.f32 %v498, %v522
        %v531 = vsub.f32 %v499, %v523
        %v532 = vsub.f32 %v500, %v524
        %v533 = vsub.f32 %v501, %v525
        %v534 = vsub.f32 %v502, %v526
        %v535 = vsub.f32 %v503, %v527
        %v536 = vmul.f32 %v528, 1.442695
        %v537 = vpow.pop %v536
        %v538 = vmul.f32 %v529, 1.442695
        %v539 = vpow.pop %v538
        %v540 = vmul.f32 %v530, 1.442695
        %v541 = vpow.pop %v540
        %v542 = vmul.f32 %v531, 1.442695
        %v543 = vpow.pop %v542
        %v544 = vmul.f32 %v532, 1.442695
        %v545 = vpow.pop %v544
        %v546 = vmul.f32 %v533, 1.442695
        %v547 = vpow.pop %v546
        %v548 = vmul.f32 %v534, 1.442695
        %v549 = vpow.pop %v548
        %v550 = vmul.f32 %v535, 1.442695
        %v551 = vpow.pop %v550
        %553 = vset.pattern.permute.xlu0 0
        %554 = vperm.xlu0 %553, %v520
        %v555 = vpop.permute.xlu0 %554
        %558 = vset.pattern.permute.xlu0 0
        %559 = vperm.xlu0 %558, %v521
        %v560 = vpop.permute.xlu0 %559
        %563 = vset.pattern.permute.xlu0 0
        %564 = vperm.xlu0 %563, %v522
        %v565 = vpop.permute.xlu0 %564
        %568 = vset.pattern.permute.xlu0 0
        %569 = vperm.xlu0 %568, %v523
        %v570 = vpop.permute.xlu0 %569
        %573 = vset.pattern.permute.xlu0 0
        %574 = vperm.xlu0 %573, %v524
        %v575 = vpop.permute.xlu0 %574
        %578 = vset.pattern.permute.xlu0 0
        %579 = vperm.xlu0 %578, %v525
        %v580 = vpop.permute.xlu0 %579
        %583 = vset.pattern.permute.xlu0 0
        %584 = vperm.xlu0 %583, %v526
        %v585 = vpop.permute.xlu0 %584
        %588 = vset.pattern.permute.xlu0 0
        %589 = vperm.xlu0 %588, %v527
        %v590 = vpop.permute.xlu0 %589
        %v592 = vsub.f32 %v488, %v555
        %v593 = vsub.f32 %v489, %v560
        %v594 = vsub.f32 %v490, %v565
        %v595 = vsub.f32 %v491, %v570
        %v596 = vsub.f32 %v492, %v575
        %v597 = vsub.f32 %v493, %v580
        %v598 = vsub.f32 %v494, %v585
        %v599 = vsub.f32 %v495, %v590
        %v600 = vmul.f32 %v592, 1.442695
        %v601 = vpow.pop %v600
        %v602 = vmul.f32 %v593, 1.442695
        %v603 = vpow.pop %v602
        %v604 = vmul.f32 %v594, 1.442695
        %v605 = vpow.pop %v604
        %v606 = vmul.f32 %v595, 1.442695
        %v607 = vpow.pop %v606
        %v608 = vmul.f32 %v596, 1.442695
        %v609 = vpow.pop %v608
        %v610 = vmul.f32 %v597, 1.442695
        %v611 = vpow.pop %v610
        %v612 = vmul.f32 %v598, 1.442695
        %v613 = vpow.pop %v612
        %v614 = vmul.f32 %v599, 1.442695
        %v615 = vpow.pop %v614
        %v616 = vsel %vm480, %v601, 0.0
        %v617 = vsel %vm481, %v603, 0.0
        %v618 = vsel %vm482, %v605, 0.0
        %v619 = vsel %vm483, %v607, 0.0
        %v620 = vsel %vm484, %v609, 0.0
        %v621 = vsel %vm485, %v611, 0.0
        %v622 = vsel %vm486, %v613, 0.0
        %v623 = vsel %vm487, %v615, 0.0
        %v624 = vld [vmem:[#allocation3] sm:$0xff]
        %v625 = vld [vmem:[#allocation3 + $0x8] sm:$0xff]
        %v626 = vld [vmem:[#allocation3 + $0x10] sm:$0xff]
        %v627 = vld [vmem:[#allocation3 + $0x18] sm:$0xff]
        %v628 = vld [vmem:[#allocation3 + $0x20] sm:$0xff]
        %v629 = vld [vmem:[#allocation3 + $0x28] sm:$0xff]
        %v630 = vld [vmem:[#allocation3 + $0x30] sm:$0xff]
        %v631 = vld [vmem:[#allocation3 + $0x38] sm:$0xff]
        %v632 = vmul.f32 %v537, %v624
        %v633 = vmul.f32 %v539, %v625
        %v634 = vmul.f32 %v541, %v626
        %v635 = vmul.f32 %v543, %v627
        %v636 = vmul.f32 %v545, %v628
        %v637 = vmul.f32 %v547, %v629
        %v638 = vmul.f32 %v549, %v630
        %v639 = vmul.f32 %v551, %v631
        %640 = vadd.xlane.f32.xlu0 %v616
        %v641 = vpop.xlane.xlu0 %640
        %642 = vadd.xlane.f32.xlu0 %v617
        %v643 = vpop.xlane.xlu0 %642
        %644 = vadd.xlane.f32.xlu0 %v618
        %v645 = vpop.xlane.xlu0 %644
        %646 = vadd.xlane.f32.xlu0 %v619
        %v647 = vpop.xlane.xlu0 %646
        %648 = vadd.xlane.f32.xlu0 %v620
        %v649 = vpop.xlane.xlu0 %648
        %650 = vadd.xlane.f32.xlu0 %v621
        %v651 = vpop.xlane.xlu0 %650
        %652 = vadd.xlane.f32.xlu0 %v622
        %v653 = vpop.xlane.xlu0 %652
        %654 = vadd.xlane.f32.xlu0 %v623
        %v655 = vpop.xlane.xlu0 %654
        %v656 = vadd.f32 %v632, %v641
        %v657 = vadd.f32 %v633, %v643
        %v658 = vadd.f32 %v634, %v645
        %v659 = vadd.f32 %v635, %v647
        %v660 = vadd.f32 %v636, %v649
        %v661 = vadd.f32 %v637, %v651
        %v662 = vadd.f32 %v638, %v653
        %v663 = vadd.f32 %v639, %v655
        %vm664 = vcmask 7168
        %665 = vst.msk [vmem:[#allocation3] sm:$0xff] %vm664, %v656
        %666 = vst.msk [vmem:[#allocation3 + $0x8] sm:$0xff] %vm664, %v657
        %667 = vst.msk [vmem:[#allocation3 + $0x10] sm:$0xff] %vm664, %v658
        %668 = vst.msk [vmem:[#allocation3 + $0x18] sm:$0xff] %vm664, %v659
        %669 = vst.msk [vmem:[#allocation3 + $0x20] sm:$0xff] %vm664, %v660
        %670 = vst.msk [vmem:[#allocation3 + $0x28] sm:$0xff] %vm664, %v661
        %671 = vst.msk [vmem:[#allocation3 + $0x30] sm:$0xff] %vm664, %v662
        %672 = vst.msk [vmem:[#allocation3 + $0x38] sm:$0xff] %vm664, %v663
        %v673 = vld [vmem:[#allocation4] sm:$0xff]
        %v674 = vld [vmem:[#allocation4 + $0x8] sm:$0xff]
        %v675 = vld [vmem:[#allocation4 + $0x10] sm:$0xff]
        %v676 = vld [vmem:[#allocation4 + $0x18] sm:$0xff]
        %v677 = vld [vmem:[#allocation4 + $0x20] sm:$0xff]
        %v678 = vld [vmem:[#allocation4 + $0x28] sm:$0xff]
        %v679 = vld [vmem:[#allocation4 + $0x30] sm:$0xff]
        %v680 = vld [vmem:[#allocation4 + $0x38] sm:$0xff]
        %682 = vset.pattern.permute.xlu0 0
        %683 = vperm.xlu0 %682, %v537
        %v684 = vpop.permute.xlu0 %683
        %687 = vset.pattern.permute.xlu0 0
        %688 = vperm.xlu0 %687, %v539
        %v689 = vpop.permute.xlu0 %688
        %692 = vset.pattern.permute.xlu0 0
        %693 = vperm.xlu0 %692, %v541
        %v694 = vpop.permute.xlu0 %693
        %697 = vset.pattern.permute.xlu0 0
        %698 = vperm.xlu0 %697, %v543
        %v699 = vpop.permute.xlu0 %698
        %702 = vset.pattern.permute.xlu0 0
        %703 = vperm.xlu0 %702, %v545
        %v704 = vpop.permute.xlu0 %703
        %707 = vset.pattern.permute.xlu0 0
        %708 = vperm.xlu0 %707, %v547
        %v709 = vpop.permute.xlu0 %708
        %712 = vset.pattern.permute.xlu0 0
        %713 = vperm.xlu0 %712, %v549
        %v714 = vpop.permute.xlu0 %713
        %717 = vset.pattern.permute.xlu0 0
        %718 = vperm.xlu0 %717, %v551
        %v719 = vpop.permute.xlu0 %718
        %v721 = vmul.f32 %v684, %v673
        %v722 = vmul.f32 %v689, %v674
        %v723 = vmul.f32 %v694, %v675
        %v724 = vmul.f32 %v699, %v676
        %v725 = vmul.f32 %v704, %v677
        %v726 = vmul.f32 %v709, %v678
        %v727 = vmul.f32 %v714, %v679
        %v728 = vmul.f32 %v719, %v680
        %v729 = vpack.c.bf16 %v617, %v616
        %v730 = vpack.c.bf16 %v619, %v618
        %v731 = vpack.c.bf16 %v621, %v620
        %v732 = vpack.c.bf16 %v623, %v622
        %v733 = vld [vmem:[%s295] sm:$0xf]
        %v734 = vld [vmem:[%s295 + $0x4] sm:$0xf]
        %v735 = vld [vmem:[%s295 + $0x8] sm:$0xf]
        %v736 = vld [vmem:[%s295 + $0xc] sm:$0xf]
        %v737 = vld [vmem:[%s295 + $0x10] sm:$0xf]
        %v738 = vld [vmem:[%s295 + $0x14] sm:$0xf]
        %v739 = vld [vmem:[%s295 + $0x18] sm:$0xf]
        %v740 = vld [vmem:[%s295 + $0x1c] sm:$0xf]
        %v741 = vld [vmem:[%s295 + $0x20] sm:$0xf]
        %v742 = vld [vmem:[%s295 + $0x24] sm:$0xf]
        %v743 = vld [vmem:[%s295 + $0x28] sm:$0xf]
        %v744 = vld [vmem:[%s295 + $0x2c] sm:$0xf]
        %v745 = vld [vmem:[%s295 + $0x30] sm:$0xf]
        %v746 = vld [vmem:[%s295 + $0x34] sm:$0xf]
        %v747 = vld [vmem:[%s295 + $0x38] sm:$0xf]
        %v748 = vld [vmem:[%s295 + $0x3c] sm:$0xf]
        %v765 = vunpack.c.l.b16 %v733
        %v766 = vunpack.c.l.b16 %v734
        %v767 = vunpack.c.l.b16 %v735
        %v768 = vunpack.c.l.b16 %v736
        %v769 = vunpack.c.l.b16 %v737
        %v770 = vunpack.c.l.b16 %v738
        %v771 = vunpack.c.l.b16 %v739
        %v772 = vunpack.c.l.b16 %v740
        %v773 = vunpack.c.l.b16 %v741
        %v774 = vunpack.c.l.b16 %v742
        %v775 = vunpack.c.l.b16 %v743
        %v776 = vunpack.c.l.b16 %v744
        %v777 = vunpack.c.l.b16 %v745
        %v778 = vunpack.c.l.b16 %v746
        %v779 = vunpack.c.l.b16 %v747
        %v780 = vunpack.c.l.b16 %v748
        %v781 = vpack.c.b16 %v766, %v765
        %v782 = vpack.c.b16 %v768, %v767
        %v783 = vpack.c.b16 %v770, %v769
        %v784 = vpack.c.b16 %v772, %v771
        %v785 = vpack.c.b16 %v774, %v773
        %v786 = vpack.c.b16 %v776, %v775
        %v787 = vpack.c.b16 %v778, %v777
        %v788 = vpack.c.b16 %v780, %v779
        %797 = vmatprep.subr.bf16.mxu0 0
        %798 = vmatpush1.bf16.msra.mxu0 %v788
        %799 = vmatprep.subr.bf16.mxu0 0
        %800 = vmatpush1.bf16.msra.mxu0 %v787
        %801 = vmatprep.subr.bf16.mxu0 0
        %802 = vmatpush1.bf16.msra.mxu0 %v786
        %803 = vmatprep.subr.bf16.mxu0 0
        %804 = vmatpush1.bf16.msra.mxu0 %v785
        %805 = vmatprep.subr.bf16.mxu0 0
        %806 = vmatpush1.bf16.msra.mxu0 %v784
        %807 = vmatprep.subr.bf16.mxu0 0
        %808 = vmatpush1.bf16.msra.mxu0 %v783
        %809 = vmatprep.subr.bf16.mxu0 0
        %810 = vmatpush1.bf16.msra.mxu0 %v782
        %811 = vmatprep.subr.bf16.mxu0 0
        %812 = vmatpush1.bf16.msra.mxu0 %v781
        %813 = vmatprep.subr.bf16.mxu0 0
        %814 = vmatpush2.bf16.msra.mxu0 0
        %815 = vmatprep.subr.bf16.mxu0 0
        %816 = vmatpush2.bf16.msra.mxu0 0
        %817 = vmatprep.subr.bf16.mxu0 0
        %818 = vmatpush2.bf16.msra.mxu0 0
        %819 = vmatprep.subr.bf16.mxu0 0
        %820 = vmatpush2.bf16.msra.mxu0 0
        %821 = vmatprep.subr.bf16.mxu0 0
        %822 = vmatpush2.bf16.msra.mxu0 0
        %823 = vmatprep.subr.bf16.mxu0 0
        %824 = vmatpush2.bf16.msra.mxu0 0
        %825 = vmatprep.subr.bf16.mxu0 0
        %826 = vmatpush2.bf16.msra.mxu0 0
        %827 = vmatprep.subr.bf16.mxu0 0
        %828 = vmatpush2.bf16.msra.mxu0 0
        %829 = vmatprep.mubr.bf16.mxu0 0
        %830 = vmatmul.mubr.bf16.gmra.mxu0 %v729
        %v831 = vpop.f32.mrf.mxu0
        %v832 = vadd.f32 0.0, %v831
        %v833 = vpop.f32.mrf.mxu0
        %v834 = vpop.f32.mrf.mxu0
        %v835 = vadd.f32 0.0, %v834
        %v836 = vpop.f32.mrf.mxu0
        %837 = vmatprep.mubr.bf16.mxu0 0
        %838 = vmatmul.mubr.bf16.gmra.mxu0 %v730
        %v839 = vpop.f32.mrf.mxu0
        %v840 = vadd.f32 0.0, %v839
        %v841 = vpop.f32.mrf.mxu0
        %v842 = vpop.f32.mrf.mxu0
        %v843 = vadd.f32 0.0, %v842
        %v844 = vpop.f32.mrf.mxu0
        %845 = vmatprep.mubr.bf16.mxu0 0
        %846 = vmatmul.mubr.bf16.gmra.mxu0 %v731
        %v847 = vpop.f32.mrf.mxu0
        %v848 = vadd.f32 0.0, %v847
        %v849 = vpop.f32.mrf.mxu0
        %v850 = vpop.f32.mrf.mxu0
        %v851 = vadd.f32 0.0, %v850
        %v852 = vpop.f32.mrf.mxu0
        %853 = vmatprep.mubr.bf16.mxu0 0
        %854 = vmatmul.mubr.bf16.gmra.mxu0 %v732
        %v855 = vpop.f32.mrf.mxu0
        %v856 = vadd.f32 0.0, %v855
        %v857 = vpop.f32.mrf.mxu0
        %v858 = vpop.f32.mrf.mxu0
        %v859 = vadd.f32 0.0, %v858
        %v860 = vpop.f32.mrf.mxu0
        %861 = vdwg.mxu0
        %v862 = vadd.f32 %v721, %v832
        %v863 = vadd.f32 %v722, %v835
        %v864 = vadd.f32 %v723, %v840
        %v865 = vadd.f32 %v724, %v843
        %v866 = vadd.f32 %v725, %v848
        %v867 = vadd.f32 %v726, %v851
        %v868 = vadd.f32 %v727, %v856
        %v869 = vadd.f32 %v728, %v859
        %870 = vst [vmem:[#allocation4] sm:$0xff] %v862
        %871 = vst [vmem:[#allocation4 + $0x8] sm:$0xff] %v863
        %872 = vst [vmem:[#allocation4 + $0x10] sm:$0xff] %v864
        %873 = vst [vmem:[#allocation4 + $0x18] sm:$0xff] %v865
        %874 = vst [vmem:[#allocation4 + $0x20] sm:$0xff] %v866
        %875 = vst [vmem:[#allocation4 + $0x28] sm:$0xff] %v867
        %876 = vst [vmem:[#allocation4 + $0x30] sm:$0xff] %v868
        %877 = vst [vmem:[#allocation4 + $0x38] sm:$0xff] %v869
        %878 = vst.msk [vmem:[#allocation2] sm:$0xff] %vm664, %v520
        %879 = vst.msk [vmem:[#allocation2 + $0x8] sm:$0xff] %vm664, %v521
        %880 = vst.msk [vmem:[#allocation2 + $0x10] sm:$0xff] %vm664, %v522
        %881 = vst.msk [vmem:[#allocation2 + $0x18] sm:$0xff] %vm664, %v523
        %882 = vst.msk [vmem:[#allocation2 + $0x20] sm:$0xff] %vm664, %v524
        %883 = vst.msk [vmem:[#allocation2 + $0x28] sm:$0xff] %vm664, %v525
        %884 = vst.msk [vmem:[#allocation2 + $0x30] sm:$0xff] %vm664, %v526
        %885 = vst.msk [vmem:[#allocation2 + $0x38] sm:$0xff] %vm664, %v527
        // Predicated region
        $region45: #{tpu_custom_call.1} parent=39 // pred_check
          %p886 = pneg %p310
        $region46: #{tpu_custom_call.1} parent=39 // pred_check_branch
          %888 = sbr.rel (%p886) target = $region48
        $region47: #{tpu_custom_call.1} parent=39 // pred_region
          %v889 = vld [vmem:[#allocation4] sm:$0xff]
          %v890 = vld [vmem:[#allocation4 + $0x8] sm:$0xff]
          %v891 = vld [vmem:[#allocation4 + $0x10] sm:$0xff]
          %v892 = vld [vmem:[#allocation4 + $0x18] sm:$0xff]
          %v893 = vld [vmem:[#allocation4 + $0x20] sm:$0xff]
          %v894 = vld [vmem:[#allocation4 + $0x28] sm:$0xff]
          %v895 = vld [vmem:[#allocation4 + $0x30] sm:$0xff]
          %v896 = vld [vmem:[#allocation4 + $0x38] sm:$0xff]
          %v897 = vld [vmem:[#allocation3] sm:$0xff]
          %v898 = vld [vmem:[#allocation3 + $0x8] sm:$0xff]
          %v899 = vld [vmem:[#allocation3 + $0x10] sm:$0xff]
          %v900 = vld [vmem:[#allocation3 + $0x18] sm:$0xff]
          %v901 = vld [vmem:[#allocation3 + $0x20] sm:$0xff]
          %v902 = vld [vmem:[#allocation3 + $0x28] sm:$0xff]
          %v903 = vld [vmem:[#allocation3 + $0x30] sm:$0xff]
          %v904 = vld [vmem:[#allocation3 + $0x38] sm:$0xff]
          %v905 = vrcp.pop %v897
          %v906 = vrcp.pop %v898
          %v907 = vrcp.pop %v899
          %v908 = vrcp.pop %v900
          %v909 = vrcp.pop %v901
          %v910 = vrcp.pop %v902
          %v911 = vrcp.pop %v903
          %v912 = vrcp.pop %v904
          %914 = vset.pattern.permute.xlu0 0
          %915 = vperm.xlu0 %914, %v905
          %v916 = vpop.permute.xlu0 %915
          %919 = vset.pattern.permute.xlu0 0
          %920 = vperm.xlu0 %919, %v906
          %v921 = vpop.permute.xlu0 %920
          %924 = vset.pattern.permute.xlu0 0
          %925 = vperm.xlu0 %924, %v907
          %v926 = vpop.permute.xlu0 %925
          %929 = vset.pattern.permute.xlu0 0
          %930 = vperm.xlu0 %929, %v908
          %v931 = vpop.permute.xlu0 %930
          %934 = vset.pattern.permute.xlu0 0
          %935 = vperm.xlu0 %934, %v909
          %v936 = vpop.permute.xlu0 %935
          %939 = vset.pattern.permute.xlu0 0
          %940 = vperm.xlu0 %939, %v910
          %v941 = vpop.permute.xlu0 %940
          %944 = vset.pattern.permute.xlu0 0
          %945 = vperm.xlu0 %944, %v911
          %v946 = vpop.permute.xlu0 %945
          %949 = vset.pattern.permute.xlu0 0
          %950 = vperm.xlu0 %949, %v912
          %v951 = vpop.permute.xlu0 %950
          %v953 = vmul.f32 %v889, %v916
          %v954 = vmul.f32 %v890, %v921
          %v955 = vmul.f32 %v891, %v926
          %v956 = vmul.f32 %v892, %v931
          %v957 = vmul.f32 %v893, %v936
          %v958 = vmul.f32 %v894, %v941
          %v959 = vmul.f32 %v895, %v946
          %v960 = vmul.f32 %v896, %v951
          %v961 = vld [vmem:[%s4] sm:$0x1]
          %v963 = vlaneseq
          %v964 = vshrl.u32 %v963, 7
          %v965 = vsub.s32 0, %v964
          %v966 = vrot.slane %v961, %v965
          %v968 = vadd.f32 %v953, %v966
          %v969 = vadd.f32 %v954, %v966
          %v970 = vadd.f32 %v955, %v966
          %v971 = vadd.f32 %v956, %v966
          %v972 = vadd.f32 %v957, %v966
          %v973 = vadd.f32 %v958, %v966
          %v974 = vadd.f32 %v959, %v966
          %v975 = vadd.f32 %v960, %v966
          %vm976 = vcmp.gt.f32.partialorder %v968, 0.0
          %vm977 = vcmp.gt.f32.partialorder %v969, 0.0
          %vm978 = vcmp.gt.f32.partialorder %v970, 0.0
          %vm979 = vcmp.gt.f32.partialorder %v971, 0.0
          %vm980 = vcmp.gt.f32.partialorder %v972, 0.0
          %vm981 = vcmp.gt.f32.partialorder %v973, 0.0
          %vm982 = vcmp.gt.f32.partialorder %v974, 0.0
          %vm983 = vcmp.gt.f32.partialorder %v975, 0.0
          %v984 = vmin.f32 %v968, 0.0
          %v985 = vmin.f32 %v969, 0.0
          %v986 = vmin.f32 %v970, 0.0
          %v987 = vmin.f32 %v971, 0.0
          %v988 = vmin.f32 %v972, 0.0
          %v989 = vmin.f32 %v973, 0.0
          %v990 = vmin.f32 %v974, 0.0
          %v991 = vmin.f32 %v975, 0.0
          %v992 = vmul.f32 %v984, 1.442695
          %v993 = vpow.pop %v992
          %v994 = vmul.f32 %v985, 1.442695
          %v995 = vpow.pop %v994
          %v996 = vmul.f32 %v986, 1.442695
          %v997 = vpow.pop %v996
          %v998 = vmul.f32 %v987, 1.442695
          %v999 = vpow.pop %v998
          %v1000 = vmul.f32 %v988, 1.442695
          %v1001 = vpow.pop %v1000
          %v1002 = vmul.f32 %v989, 1.442695
          %v1003 = vpow.pop %v1002
          %v1004 = vmul.f32 %v990, 1.442695
          %v1005 = vpow.pop %v1004
          %v1006 = vmul.f32 %v991, 1.442695
          %v1007 = vpow.pop %v1006
          %v1008 = vsub.f32 %v993, 1.0
          %v1009 = vsub.f32 %v995, 1.0
          %v1010 = vsub.f32 %v997, 1.0
          %v1011 = vsub.f32 %v999, 1.0
          %v1012 = vsub.f32 %v1001, 1.0
          %v1013 = vsub.f32 %v1003, 1.0
          %v1014 = vsub.f32 %v1005, 1.0
          %v1015 = vsub.f32 %v1007, 1.0
          %v1016 = vsel %vm976, %v968, %v1008
          %v1017 = vsel %vm977, %v969, %v1009
          %v1018 = vsel %vm978, %v970, %v1010
          %v1019 = vsel %vm979, %v971, %v1011
          %v1020 = vsel %vm980, %v972, %v1012
          %v1021 = vsel %vm981, %v973, %v1013
          %v1022 = vsel %vm982, %v974, %v1014
          %v1023 = vsel %vm983, %v975, %v1015
          %v1024 = vpack.c.bf16 %v1017, %v1016
          %v1025 = vpack.c.bf16 %v1019, %v1018
          %v1026 = vpack.c.bf16 %v1021, %v1020
          %v1027 = vpack.c.bf16 %v1023, %v1022
          %v1032 = vunpack.c.l.b16 %v1024
          %v1033 = vunpack.c.h.b16 %v1024
          %v1034 = vunpack.c.l.b16 %v1025
          %v1035 = vunpack.c.h.b16 %v1025
          %v1036 = vunpack.c.l.b16 %v1026
          %v1037 = vunpack.c.h.b16 %v1026
          %v1038 = vunpack.c.l.b16 %v1027
          %v1039 = vunpack.c.h.b16 %v1027
          %v1040 = vpack.c.b16 %v1032, %v1032
          %v1041 = vpack.c.b16 %v1033, %v1033
          %v1042 = vpack.c.b16 %v1034, %v1034
          %v1043 = vpack.c.b16 %v1035, %v1035
          %v1044 = vpack.c.b16 %v1036, %v1036
          %v1045 = vpack.c.b16 %v1037, %v1037
          %v1046 = vpack.c.b16 %v1038, %v1038
          %v1047 = vpack.c.b16 %v1039, %v1039
          %1056 = vst [vmem:[%s281] sm:$0xf] %v1040
          %1057 = vst [vmem:[%s281 + $0x4] sm:$0xf] %v1041
          %1058 = vst [vmem:[%s281 + $0x8] sm:$0xf] %v1042
          %1059 = vst [vmem:[%s281 + $0xc] sm:$0xf] %v1043
          %1060 = vst [vmem:[%s281 + $0x10] sm:$0xf] %v1044
          %1061 = vst [vmem:[%s281 + $0x14] sm:$0xf] %v1045
          %1062 = vst [vmem:[%s281 + $0x18] sm:$0xf] %v1046
          %1063 = vst [vmem:[%s281 + $0x1c] sm:$0xf] %v1047
        $region48: #{tpu_custom_call.1} parent=39 // pred_fallthru
          _
        %s1064 = sand.u32 %s166, 1
        %s1065 = scalar_lea.sflag [#allocation6], %s1064
        %s1066 = sand.u32 %s166, 1
        %s1067 = smul.addr %s1066, 32
        %s1068 = scalar_lea.vmem [#allocation5], %s1067
        // Predicated region
        $region49: #{tpu_custom_call.1} parent=39 // pred_check
          %p1069 = pneg %p176
        $region50: #{tpu_custom_call.1} parent=39 // pred_check_branch
          %1071 = sbr.rel (%p1069) target = $region52
        $region51: #{tpu_custom_call.1} parent=39 // pred_region
          %s1072 = smul.u32 8, %s23
          %s1074 = ssub.s32 512, 512
          %1075 = vsyncadd %s1065, %s1074
          %s1076 = smul.addr %s1072, 64
          %s1077 = scalar_lea.hbm %s5, %s1076
          %s1078 = sshll.u32 %s1068, 4
          %s1079 = int_to_ptr.vmem [resolvable:$true] %s1078
          %1084 = dma.vmem_to_hbm [thread:$0]  %s1079, 512, %s1077, %s1065, 64, 64, 4
        $region52: #{tpu_custom_call.1} parent=39 // pred_fallthru
          _
      $region40: #{tpu_custom_call.1} parent=5 // pred_fallthru
        _
      %p1085 = scmp.le.s32.totalorder 2, %s14
      // Predicated region
      $region53: #{tpu_custom_call.1} parent=5 // pred_check
        %p1086 = pneg %p1085
      $region54: #{tpu_custom_call.1} parent=5 // pred_check_branch
        %1088 = sbr.rel (%p1086) target = $region56
      $region55: #{tpu_custom_call.1} parent=5 // pred_region
        %s1089 = ssub.s32 %s14, 2
        // Predicated region
        $region57: #{tpu_custom_call.1} parent=55 // pred_check
          %p1090 = pneg %p182
        $region58: #{tpu_custom_call.1} parent=55 // pred_check_branch
          %1092 = sbr.rel (%p1090) target = $region60
        $region59: #{tpu_custom_call.1} parent=55 // pred_region
          %s1093 = sand.u32 %s167, 1
          %s1094 = scalar_lea.sflag [#allocation6], %s1093
          %s1095 = sand.u32 %s167, 1
          %s1096 = smul.addr %s1095, 32
          %s1097 = scalar_lea.vmem [#allocation5], %s1096
          %1098 = dma.done %s1094, 512
        $region60: #{tpu_custom_call.1} parent=55 // pred_fallthru
          _
      $region56: #{tpu_custom_call.1} parent=5 // pred_fallthru
        _
    $region6: #{tpu_custom_call.1} parent=1 // loop_footer
      %s18 = sadd.s32 1, %s14
    $region7: #{tpu_custom_call.1} parent=1 // loop_footer_branch
      %13 = sbr.rel target = $region3
    $region8: #{tpu_custom_call.1} parent=1 // loop_exit
      _
    %1099 = vsyncpa [#allocation6], 1
    %s1100 = scalar_lea.sflag [#allocation6], 1
    %1101 = vsyncpa %s1100, 1

</llo_original>
